<compile_context>
chip_gen: v5e
topology: v5e:2x2
jax: 0.10.0
libtpu: 0.0.40
codegen_flags: <defaults>
</compile_context>

<pallas_src>
import math

import jax
import jax.numpy as jnp
from jax import lax
from jax.experimental import pallas as pl
from jax.experimental.pallas import tpu as pltpu


# ----------------------------------------------------------------------------
# Pallas kernels
# ----------------------------------------------------------------------------

def _guided_p_sample_kernel(x_ref, c_ref, u_ref, v_ref, n_ref, coef_ref, o_ref):
    """Fused CFG combine + one ancestral (p_sample) step, clip_denoised=True.

    coef (SMEM f32[8]): [srab, srm1ab, pmc1, pmc2, log_beta, log_pv, nz, gs]
    """
    srab = coef_ref[0]
    srm1ab = coef_ref[1]
    pmc1 = coef_ref[2]
    pmc2 = coef_ref[3]
    log_beta = coef_ref[4]
    log_pv = coef_ref[5]
    nz = coef_ref[6]
    gs = coef_ref[7]

    c = c_ref[...]
    u = u_ref[...]
    eps = u + gs * (c - u)                       # half_eps (shared by both halves)

    x = x_ref[...]
    v = v_ref[...]
    noise = n_ref[...]

    x0 = jnp.clip(srab * x - srm1ab * eps, -1.0, 1.0)
    mean = pmc1 * x0 + pmc2 * x
    frac = (v + 1.0) * 0.5                       # learned-range variance interp
    log_var = frac * log_beta + (1.0 - frac) * log_pv
    o_ref[...] = mean + nz * jnp.exp(0.5 * log_var) * noise


def _ddim_step_kernel(x_ref, e_ref, coef_ref, o_ref):
    """One DDIM (eta=0) step, clip_denoised=True.

    coef (SMEM f32[8]): [srab, srm1ab, inv_srm1ab, sqrt(ab_prev), sqrt(1-ab_prev), 0,0,0]
    """
    srab = coef_ref[0]
    srm1ab = coef_ref[1]
    inv_srm1ab = coef_ref[2]
    s_ab_prev = coef_ref[3]
    s_1m_ab_prev = coef_ref[4]

    x = x_ref[...]
    eps = e_ref[...]
    pred = srab * x
    x0 = jnp.clip(pred - srm1ab * eps, -1.0, 1.0)
    eps2 = (pred - x0) * inv_srm1ab              # multiply by precomputed inverse
    o_ref[...] = s_ab_prev * x0 + s_1m_ab_prev * eps2


def _requant_kernel(x_ref, o_ref):
    # ((low_image + 1) * 127.5).round() / 127.5 - 1
    o_ref[...] = jnp.round((x_ref[...] + 1.0) * 127.5) * (1.0 / 127.5) - 1.0


# ----------------------------------------------------------------------------
# Pallas wrappers
# ----------------------------------------------------------------------------

def fused_guided_p_sample(x, cond_eps, uncond_eps, v, noise, coef):
    """x,v,noise: (2B,3,H,W); cond/uncond: (B,3,H,W); coef: f32[8]."""
    two_b, c, h, w = x.shape
    half_elems = (two_b // 2) * c * h * w
    assert half_elems % 128 == 0, "per-half element count must be lane-dense"
    rows = half_elems // 128

    x3 = x.reshape(2, rows, 128)
    v3 = v.reshape(2, rows, 128)
    n3 = noise.reshape(2, rows, 128)
    c2 = cond_eps.reshape(rows, 128)
    u2 = uncond_eps.reshape(rows, 128)

    out = pl.pallas_call(
        _guided_p_sample_kernel,
        out_shape=jax.ShapeDtypeStruct((2, rows, 128), jnp.float32),
        grid=(2,),  # grid over batch halves; both halves read the SAME eps block
        in_specs=[
            pl.BlockSpec((None, rows, 128), lambda i: (i, 0, 0)),   # x   (per half)
            pl.BlockSpec((rows, 128), lambda i: (0, 0)),            # cond_eps (shared)
            pl.BlockSpec((rows, 128), lambda i: (0, 0)),            # uncond_eps (shared)
            pl.BlockSpec((None, rows, 128), lambda i: (i, 0, 0)),   # v   (per half)
            pl.BlockSpec((None, rows, 128), lambda i: (i, 0, 0)),   # noise
            pl.BlockSpec(memory_space=pltpu.MemorySpace.SMEM),      # coef scalars
        ],
        out_specs=pl.BlockSpec((None, rows, 128), lambda i: (i, 0, 0)),
        input_output_aliases={0: 0},  # update x in place
        compiler_params=pltpu.CompilerParams(
            dimension_semantics=("parallel",)),
    )(x3, c2, u2, v3, n3, coef)
    return out.reshape(x.shape)


def fused_ddim_step(x, eps, coef):
    """x, eps: (B,3,H,W); coef: f32[8]."""
    total = x.size
    assert total % 128 == 0
    rows = total // 128
    # split the row dim into a small parallel grid when it stays (8,128)-aligned
    if rows % 16 == 0:
        grid_n, tile = 2, rows // 2
    else:
        grid_n, tile = 1, rows

    x2 = x.reshape(rows, 128)
    e2 = eps.reshape(rows, 128)

    out = pl.pallas_call(
        _ddim_step_kernel,
        out_shape=jax.ShapeDtypeStruct((rows, 128), jnp.float32),
        grid=(grid_n,),
        in_specs=[
            pl.BlockSpec((tile, 128), lambda i: (i, 0)),            # x
            pl.BlockSpec((tile, 128), lambda i: (i, 0)),            # eps
            pl.BlockSpec(memory_space=pltpu.MemorySpace.SMEM),      # coef scalars
        ],
        out_specs=pl.BlockSpec((tile, 128), lambda i: (i, 0)),
        input_output_aliases={0: 0},
        compiler_params=pltpu.CompilerParams(
            dimension_semantics=("parallel",)),
    )(x2, e2, coef)
    return out.reshape(x.shape)


def requant(low_image):
    total = low_image.size
    assert total % 128 == 0
    rows = total // 128
    x2 = low_image.reshape(rows, 128)
    out = pl.pallas_call(
        _requant_kernel,
        out_shape=jax.ShapeDtypeStruct((rows, 128), jnp.float32),
        grid=(1,),
        in_specs=[pl.BlockSpec((rows, 128), lambda i: (0, 0))],
        out_specs=pl.BlockSpec((rows, 128), lambda i: (0, 0)),
    )(x2)
    return out.reshape(low_image.shape)


# ----------------------------------------------------------------------------
# Diffusion schedule (stand-in for create_model_and_diffusion's respaced betas)
# ----------------------------------------------------------------------------

def make_schedule(num_steps, kind):
    if kind == "cosine":  # squaredcos_cap_v2 (GLIDE base model)
        def f(t):
            return math.cos((t / num_steps + 0.008) / 1.008 * math.pi / 2) ** 2
        betas = [min(1.0 - f(i + 1) / f(i), 0.999) for i in range(num_steps)]
    else:                 # linear (GLIDE upsampler)
        b0, b1 = 1e-4, 0.02
        betas = [b0 + (b1 - b0) * i / max(num_steps - 1, 1) for i in range(num_steps)]
    alphas = [1.0 - b for b in betas]
    ab, cur = [], 1.0
    for a in alphas:
        cur *= a
        ab.append(cur)
    return betas, alphas, ab


def build_base_coefs(betas, alphas, ab, guidance_scale):
    """Per-timestep scalar table (reversed so scan iterates t = T-1 .. 0)."""
    rows = []
    for t in range(len(betas)):
        ab_t = ab[t]
        ab_prev = ab[t - 1] if t > 0 else 1.0
        beta_t = betas[t]
        srab = math.sqrt(1.0 / ab_t)
        srm1ab = math.sqrt(1.0 / ab_t - 1.0)
        pmc1 = beta_t * math.sqrt(ab_prev) / (1.0 - ab_t)
        pmc2 = (1.0 - ab_prev) * math.sqrt(alphas[t]) / (1.0 - ab_t)
        post_var = beta_t * (1.0 - ab_prev) / (1.0 - ab_t)
        # GLIDE's posterior_log_variance_clipped substitutes posterior_variance[1]
        # at t=0; nz=0 at t=0 makes the difference irrelevant here.
        log_pv = math.log(max(post_var, 1e-20))
        log_beta = math.log(beta_t)
        nz = 0.0 if t == 0 else 1.0
        rows.append([srab, srm1ab, pmc1, pmc2, log_beta, log_pv, nz, guidance_scale])
    return jnp.asarray(rows[::-1], dtype=jnp.float32)


def build_ddim_coefs(betas, alphas, ab):
    rows = []
    for t in range(len(betas)):
        ab_t = ab[t]
        ab_prev = ab[t - 1] if t > 0 else 1.0
        srab = math.sqrt(1.0 / ab_t)
        srm1ab = math.sqrt(1.0 / ab_t - 1.0)
        rows.append([srab, srm1ab, 1.0 / srm1ab,
                     math.sqrt(ab_prev), math.sqrt(1.0 - ab_prev), 0.0, 0.0, 0.0])
    return jnp.asarray(rows[::-1], dtype=jnp.float32)


# ----------------------------------------------------------------------------
# Placeholder UNets
# ----------------------------------------------------------------------------
# TODO(synk): the GLIDE text-conditioned UNets + BPE tokenizer + timestep
# respacing built by create_model_and_diffusion have no in-script Pallas
# equivalent; a deterministic random (eps, variance) tensor stands in for
# model(combined, ts, tokens=tokens, mask=mask).

def base_model_placeholder(x, key, tokens, mask):
    del tokens, mask
    full = x.shape[0]
    # real model_fn would feed cat([x[:full//2], x[:full//2]]) to the UNet
    return 0.1 * jax.random.normal(key, (full, 6, x.shape[2], x.shape[3]),
                                   dtype=jnp.float32)


def up_model_placeholder(x, key, low_res, tokens, mask):
    del low_res, tokens, mask
    return 0.1 * jax.random.normal(key, (x.shape[0], 6, x.shape[2], x.shape[3]),
                                   dtype=jnp.float32)


# ----------------------------------------------------------------------------
# Sampling loops (lax.scan over timesteps; per-step math in fused Pallas kernels)
# ----------------------------------------------------------------------------

def p_sample_loop(model_fn, noise, coefs_rev, keys):
    B = noise.shape[0] // 2

    def step(x, inp):
        coef, key = inp
        k_model, k_noise = jax.random.split(key)
        model_out = model_fn(x, k_model)               # (2B, 6, H, W)
        cond_eps = model_out[:B, :3]
        uncond_eps = model_out[B:, :3]
        v = model_out[:, 3:]                           # learned-range variance
        noise_t = jax.random.normal(k_noise, x.shape, dtype=jnp.float32)
        x_new = fused_guided_p_sample(x, cond_eps, uncond_eps, v, noise_t, coef)
        return x_new, None

    x_final, _ = lax.scan(step, noise, (coefs_rev, keys))
    return x_final


def ddim_sample_loop(model_up_fn, noise, coefs_rev, keys):
    def step(x, inp):
        coef, key = inp
        model_out = model_up_fn(x, key)                # (B, 6, H, W)
        eps = model_out[:, :3]
        return fused_ddim_step(x, eps, coef), None

    x_final, _ = lax.scan(step, noise, (coefs_rev, keys))
    return x_final


# ----------------------------------------------------------------------------

if __name__ == "__main__":
    # Small shapes consistent with the module structure.
    batch_size = 2
    full_batch = 2 * batch_size
    base_size = 16          # options['image_size'] (scaled down)
    up_size = 32            # options_up['image_size'] (scaled down)
    text_ctx = 8
    guidance_scale = 3.0
    upsample_temp = 0.997
    img_diff_steps = 4
    up_diff_steps = 3

    key = jax.random.PRNGKey(0)
    k_tok, k_nb, k_nu, k_loop1, k_loop2 = jax.random.split(key, 5)

    # preprocess_text stand-ins (tokenizer is external; see TODO above)
    tokens = jax.random.randint(k_tok, (full_batch, text_ctx), 0, 100, dtype=jnp.int32)
    mask = jnp.ones((full_batch, text_ctx), dtype=bool)
    upsample_tokens = tokens[:batch_size]
    upsample_mask = mask[:batch_size]

    betas_b, alphas_b, ab_b = make_schedule(img_diff_steps, "cosine")
    betas_u, alphas_u, ab_u = make_schedule(up_diff_steps, "linear")
    base_coefs = build_base_coefs(betas_b, alphas_b, ab_b, guidance_scale)
    up_coefs = build_ddim_coefs(betas_u, alphas_u, ab_u)

    base_keys = jax.random.split(k_loop1, img_diff_steps)
    up_keys = jax.random.split(k_loop2, up_diff_steps)

    img_shape = (full_batch, 3, base_size, base_size)
    up_shape = (batch_size, 3, up_size, up_size)
    base_noise = jax.random.normal(k_nb, img_shape, dtype=jnp.float32)
    up_noise = jax.random.normal(k_nu, up_shape, dtype=jnp.float32) * upsample_temp

    @jax.jit
    def run_pipeline(base_noise, base_coefs, base_keys, up_noise, up_coefs, up_keys,
                     tokens, mask, up_tokens, up_mask):
        # ---- base guided p_sample_loop ----
        model_fn = lambda x, k: base_model_placeholder(x, k, tokens, mask)
        low_image = p_sample_loop(model_fn, base_noise, base_coefs,
                                  base_keys)[:batch_size]
        # ---- low_res re-quantization (Pallas) ----
        low_res = requant(low_image)
        # ---- upsampler ddim_sample_loop ----
        model_up_fn = lambda x, k: up_model_placeholder(x, k, low_res,
                                                        up_tokens, up_mask)
        up = ddim_sample_loop(model_up_fn, up_noise, up_coefs,
                              up_keys)[:batch_size]
        return up

    up_samples = run_pipeline(base_noise, base_coefs, base_keys,
                              up_noise, up_coefs, up_keys,
                              tokens, mask, upsample_tokens, upsample_mask)
    up_samples = jax.block_until_ready(up_samples)

    assert up_samples.shape == up_shape and up_samples.dtype == jnp.float32
    assert bool(jnp.all(jnp.isfinite(up_samples)))
    print("KERNEL_OK")
</pallas_src>

<mosaic_0001>
module attributes {stable_mosaic.version = 11 : i64} {
  func.func @_ddim_step_kernel(%arg0: i32, %arg1: memref<24x128xf32, #tpu.memory_space<vmem>>, %arg2: memref<24x128xf32, #tpu.memory_space<vmem>>, %arg3: memref<8xf32, #tpu.memory_space<smem>>, %arg4: memref<24x128xf32, #tpu.memory_space<vmem>>) attributes {dimension_semantics = [#tpu.dimension_semantics<parallel>], iteration_bounds = array<i64: 2>, scalar_prefetch = 0 : i64, scratch_operands = 0 : i64, tpu.core_type = #tpu.core_type<tc>, window_params = [{transform_indices = @transform_0, window_bounds = array<i64: 24, 128>}, {transform_indices = @transform_1, window_bounds = array<i64: 24, 128>}, {transform_indices = @transform_2, window_bounds = array<i64: 8>}, {transform_indices = @transform_3, window_bounds = array<i64: 24, 128>}]} {
    %c0 = arith.constant 0 : index
    %0 = memref.load %arg3[%c0] : memref<8xf32, #tpu.memory_space<smem>>
    %c1 = arith.constant 1 : index
    %1 = memref.load %arg3[%c1] : memref<8xf32, #tpu.memory_space<smem>>
    %c2 = arith.constant 2 : index
    %2 = memref.load %arg3[%c2] : memref<8xf32, #tpu.memory_space<smem>>
    %c3 = arith.constant 3 : index
    %3 = memref.load %arg3[%c3] : memref<8xf32, #tpu.memory_space<smem>>
    %c4 = arith.constant 4 : index
    %4 = memref.load %arg3[%c4] : memref<8xf32, #tpu.memory_space<smem>>
    %c0_0 = arith.constant 0 : index
    %c0_1 = arith.constant 0 : index
    %5 = vector.load %arg1[%c0_0, %c0_1] : memref<24x128xf32, #tpu.memory_space<vmem>>, vector<24x128xf32>
    %c0_2 = arith.constant 0 : index
    %c0_3 = arith.constant 0 : index
    %6 = vector.load %arg2[%c0_2, %c0_3] : memref<24x128xf32, #tpu.memory_space<vmem>>, vector<24x128xf32>
    %7 = vector.broadcast %0 : f32 to vector<24x128xf32>
    %8 = arith.mulf %7, %5 : vector<24x128xf32>
    %9 = vector.broadcast %1 : f32 to vector<24x128xf32>
    %10 = arith.mulf %9, %6 : vector<24x128xf32>
    %11 = arith.subf %8, %10 : vector<24x128xf32>
    %cst = arith.constant -1.000000e+00 : f32
    %cst_4 = arith.constant 1.000000e+00 : f32
    %12 = vector.broadcast %cst : f32 to vector<24x128xf32>
    %13 = arith.maximumf %12, %11 : vector<24x128xf32>
    %14 = vector.broadcast %cst_4 : f32 to vector<24x128xf32>
    %15 = arith.minimumf %14, %13 : vector<24x128xf32>
    %16 = arith.subf %8, %15 : vector<24x128xf32>
    %17 = vector.broadcast %2 : f32 to vector<24x128xf32>
    %18 = arith.mulf %16, %17 : vector<24x128xf32>
    %19 = vector.broadcast %3 : f32 to vector<24x128xf32>
    %20 = arith.mulf %19, %15 : vector<24x128xf32>
    %21 = vector.broadcast %4 : f32 to vector<24x128xf32>
    %22 = arith.mulf %21, %18 : vector<24x128xf32>
    %23 = arith.addf %20, %22 : vector<24x128xf32>
    %c0_5 = arith.constant 0 : index
    %c0_6 = arith.constant 0 : index
    %24 = vector.load %arg4[%c0_5, %c0_6] : memref<24x128xf32, #tpu.memory_space<vmem>>, vector<24x128xf32>
    tpu.vector_store %arg4[%c0_5, %c0_6], %23 {strides = array<i32>} : memref<24x128xf32, #tpu.memory_space<vmem>>, vector<24x128xf32>,
    return
  }
  func.func @transform_0(%arg0: i32) -> (i32, i32) {
    %c0_i32 = arith.constant 0 : i32
    %c0_i32_0 = arith.constant 0 : i32
    return %arg0, %c0_i32 : i32, i32
  }
  func.func @transform_1(%arg0: i32) -> (i32, i32) {
    %c0_i32 = arith.constant 0 : i32
    %c0_i32_0 = arith.constant 0 : i32
    return %arg0, %c0_i32 : i32, i32
  }
  func.func @transform_2(%arg0: i32) -> i32 {
    %c0_i32 = arith.constant 0 : i32
    %c0_i32_0 = arith.constant 0 : i32
    return %c0_i32 : i32
  }
  func.func @transform_3(%arg0: i32) -> (i32, i32) {
    %c0_i32 = arith.constant 0 : i32
    %c0_i32_0 = arith.constant 0 : i32
    return %arg0, %c0_i32 : i32, i32
  }
}

</mosaic_0001>

<llo_original>
// kernel: closed_call.7
$region0: #{closed_call.7}
  #allocation0 [shape = 'u32[]', space=smem, size = 0x4, offset = 0x4, fixed_abs, tag = 'smem constant byte address 0x4 - core index']
  #allocation1 [shape = 'u32[72,128]{1,0:T(1,128)}', space=vmem, size = 0x9000, scoped, tag = 'internal scratch']
  %s0 = inlined_call_operand.vmem [shape: f32[48,128], index: 0, kind: input, shape index: {}, may-alias: {0,3}]
  %s1 = inlined_call_operand.vmem [shape: f32[48,128], index: 1, kind: input, shape index: {}]
  %s2 = inlined_call_operand.vmem [shape: f32[8], index: 2, kind: input, shape index: {}]
  %s3 = inlined_call_operand.vmem [shape: f32[48,128], index: 3, kind: output, shape index: {}, may-alias: {0,3}]
  %s4 = sld [smem:[#allocation0]]
  $region49: #{closed_call.7} parent=0
    _
  %s6 = ssub.s32 1, %s4
  %s7 = scalar_select 0, %s6, %s4
  $region1: #{closed_call.7} parent=0
    #allocation2 [shape = 'u8[512]{0}', space=smem, size = 0x200, scoped, tag = 'input window, operand 2, single buffered']
    #allocation3 [shape = 's32[2]{0}', space=sflag, size = 0x8, scoped, tag = 'scoped memory for closed_call.7']
    %8 = vsyncpa [#allocation3], 0
    loop: start=0, step=1, limit=4
    $region2: #{closed_call.7} parent=1 // loop_pre_header
      _
    $region3: #{closed_call.7} parent=1 // loop_header
      %s10 = sphi 0, %s14
      %p11 = scmp.ge.s32.totalorder %s10, 4
      %s20 = sphi 0, %s22
      %s23 = sphi 0, %s20
      %s24 = sphi 0, %s23
      %s40 = sphi 0, %s24
      %s46 = sphi 0, %s48
      %s49 = sphi 0, %s46
      %s50 = sphi 0, %s49
      %s66 = sphi 0, %s50
      %s70 = sphi 0, %s70
      %s72 = sphi 0, %s70
      %s73 = sphi 0, %s72
      %s87 = sphi 0, %s73
      %s93 = sphi 0, %s95
      %s96 = sphi 0, %s93
      %s97 = sphi 0, %s96
      %s113 = sphi 0, %s97
    $region4: #{closed_call.7} parent=1 // loop_header_branch
      %13 = sbr.rel (%p11) target = $region8
    $region5: #{closed_call.7} parent=1 // loop_body
      %s15 = ssub.s32 %s10, 1
      %s16 = ssub.s32 %s10, 2
      %s17 = sadd.s32 %s10, 1
      %s18 = ssub.s32 %s10, %s17
      %p19 = scmp.eq.s32.totalorder %s18, 0
      %s21 = sadd.s32 %s20, 1
      %s22 = scalar_select %p19, %s20, %s21
      %p25 = pneg %p19
      %p26 = scmp.eq.s32.totalorder %s10, 1
      %p27 = por %p25, %p26
      %p28 = scmp.ne.s32.totalorder %s20, %s23
      %p29 = scmp.eq.s32.totalorder %s10, 0
      %p30 = por %p28, %p29
      %p31 = scmp.ne.s32.totalorder %s20, %s23
      %p32 = scmp.eq.s32.totalorder %s15, 1
      %p33 = por %p31, %p32
      %p34 = scmp.ne.s32.totalorder %s23, %s24
      %p35 = scmp.eq.s32.totalorder %s15, 0
      %p36 = por %p34, %p35
      %p37 = scmp.ne.s32.totalorder %s23, %s24
      %p38 = scmp.eq.s32.totalorder %s16, 1
      %p39 = por %p37, %p38
      %p41 = scmp.ne.s32.totalorder %s24, %s40
      %p42 = scmp.eq.s32.totalorder %s16, 0
      %p43 = por %p41, %p42
      %s44 = ssub.s32 %s10, %s17
      %p45 = scmp.eq.s32.totalorder %s44, 0
      %s47 = sadd.s32 %s46, 1
      %s48 = scalar_select %p45, %s46, %s47
      %p51 = pneg %p45
      %p52 = scmp.eq.s32.totalorder %s10, 1
      %p53 = por %p51, %p52
      %p54 = scmp.ne.s32.totalorder %s46, %s49
      %p55 = scmp.eq.s32.totalorder %s10, 0
      %p56 = por %p54, %p55
      %p57 = scmp.ne.s32.totalorder %s46, %s49
      %p58 = scmp.eq.s32.totalorder %s15, 1
      %p59 = por %p57, %p58
      %p60 = scmp.ne.s32.totalorder %s49, %s50
      %p61 = scmp.eq.s32.totalorder %s15, 0
      %p62 = por %p60, %p61
      %p63 = scmp.ne.s32.totalorder %s49, %s50
      %p64 = scmp.eq.s32.totalorder %s16, 1
      %p65 = por %p63, %p64
      %p67 = scmp.ne.s32.totalorder %s50, %s66
      %p68 = scmp.eq.s32.totalorder %s16, 0
      %p69 = por %p67, %p68
      %s71 = sadd.s32 %s70, 1
      %p74 = scmp.eq.s32.totalorder %s10, 1
      %p75 = scmp.ne.s32.totalorder %s70, %s72
      %p76 = scmp.eq.s32.totalorder %s10, 0
      %p77 = por %p75, %p76
      %p78 = scmp.ne.s32.totalorder %s70, %s72
      %p79 = scmp.eq.s32.totalorder %s15, 1
      %p80 = por %p78, %p79
      %p81 = scmp.ne.s32.totalorder %s72, %s73
      %p82 = scmp.eq.s32.totalorder %s15, 0
      %p83 = por %p81, %p82
      %p84 = scmp.ne.s32.totalorder %s72, %s73
      %p85 = scmp.eq.s32.totalorder %s16, 1
      %p86 = por %p84, %p85
      %p88 = scmp.ne.s32.totalorder %s73, %s87
      %p89 = scmp.eq.s32.totalorder %s16, 0
      %p90 = por %p88, %p89
      %s91 = ssub.s32 %s10, %s17
      %p92 = scmp.eq.s32.totalorder %s91, 0
      %s94 = sadd.s32 %s93, 1
      %s95 = scalar_select %p92, %s93, %s94
      %p98 = pneg %p92
      %p99 = scmp.eq.s32.totalorder %s10, 1
      %p100 = por %p98, %p99
      %p101 = scmp.ne.s32.totalorder %s93, %s96
      %p102 = scmp.eq.s32.totalorder %s10, 0
      %p103 = por %p101, %p102
      %p104 = scmp.ne.s32.totalorder %s93, %s96
      %p105 = scmp.eq.s32.totalorder %s15, 1
      %p106 = por %p104, %p105
      %p107 = scmp.ne.s32.totalorder %s96, %s97
      %p108 = scmp.eq.s32.totalorder %s15, 0
      %p109 = por %p107, %p108
      %p110 = scmp.ne.s32.totalorder %s96, %s97
      %p111 = scmp.eq.s32.totalorder %s16, 1
      %p112 = por %p110, %p111
      %p114 = scmp.ne.s32.totalorder %s97, %s113
      %p115 = scmp.eq.s32.totalorder %s16, 0
      %p116 = por %p114, %p115
      %p117 = scmp.le.s32.totalorder 1, %s10
      %p118 = scmp.lt.s32.totalorder %s10, 3
      %p119 = pnand %p117, %p118
      %p120 = pneg %p119
      // Predicated region
      $region9: #{closed_call.7} parent=5 // pred_check
        _
      $region10: #{closed_call.7} parent=5 // pred_check_branch
        %122 = sbr.rel (%p119) target = $region12
      $region11: #{closed_call.7} parent=5 // pred_region
        %s123 = ssub.s32 %s10, 1
        // Predicated region
        $region13: #{closed_call.7} parent=11 // pred_check
          %p124 = pneg %p83
        $region14: #{closed_call.7} parent=11 // pred_check_branch
          %126 = sbr.rel (%p124) target = $region16
        $region15: #{closed_call.7} parent=11 // pred_region
          %128 = vsyncadd [#allocation3], 0
          %s130 = sshll.u32 %s2, 4
          %s131 = int_to_ptr.vmem [resolvable:$true] %s130
          %133 = dma.vmem_to_smem %s131, 16, [#allocation2], [#allocation3]
        $region16: #{closed_call.7} parent=11 // pred_fallthru
          _
      $region12: #{closed_call.7} parent=5 // pred_fallthru
        _
      %p134 = scmp.lt.s32.totalorder %s10, 2
      // Predicated region
      $region17: #{closed_call.7} parent=5 // pred_check
        %p135 = pneg %p134
      $region18: #{closed_call.7} parent=5 // pred_check_branch
        %137 = sbr.rel (%p135) target = $region20
      $region19: #{closed_call.7} parent=5 // pred_region
        // Predicated region
        $region21: #{closed_call.7} parent=19 // pred_check
          %p138 = pneg %p30
        $region22: #{closed_call.7} parent=19 // pred_check_branch
          %140 = sbr.rel (%p138) target = $region24
        $region23: #{closed_call.7} parent=19 // pred_region
          %s141 = smul.u32 3, %s10
          %p142 = scmp.lt.s32.totalorder %s141, 5
          %s143 = scalar_select %p142, %s141, 5
          %s144 = smul.addr %s143, 8
          %s145 = scalar_lea.vmem %s0, %s144
          %s146 = smul.u32 3, %s10
        $region24: #{closed_call.7} parent=19 // pred_fallthru
          _
        // Predicated region
        $region25: #{closed_call.7} parent=19 // pred_check
          %p147 = pneg %p56
        $region26: #{closed_call.7} parent=19 // pred_check_branch
          %149 = sbr.rel (%p147) target = $region28
        $region27: #{closed_call.7} parent=19 // pred_region
          %s150 = smul.u32 3, %s10
          %p151 = scmp.lt.s32.totalorder %s150, 5
          %s152 = scalar_select %p151, %s150, 5
          %s153 = smul.addr %s152, 8
          %s154 = scalar_lea.vmem %s1, %s153
          %s155 = smul.u32 3, %s10
        $region28: #{closed_call.7} parent=19 // pred_fallthru
          _
      $region20: #{closed_call.7} parent=5 // pred_fallthru
        _
      %p156 = scmp.le.s32.totalorder 1, %s10
      %p157 = scmp.lt.s32.totalorder %s10, 3
      %p158 = pnand %p156, %p157
      %p159 = pneg %p158
      // Predicated region
      $region29: #{closed_call.7} parent=5 // pred_check
        _
      $region30: #{closed_call.7} parent=5 // pred_check_branch
        %161 = sbr.rel (%p158) target = $region32
      $region31: #{closed_call.7} parent=5 // pred_region
        %s162 = ssub.s32 %s10, 1
        // Predicated region
        $region33: #{closed_call.7} parent=31 // pred_check
          %p163 = pneg %p83
        $region34: #{closed_call.7} parent=31 // pred_check_branch
          %165 = sbr.rel (%p163) target = $region36
        $region35: #{closed_call.7} parent=31 // pred_region
          %167 = dma.done [#allocation3], 16
        $region36: #{closed_call.7} parent=31 // pred_fallthru
          _
        %168 = sfence
        %s169 = smul.u32 3, %s15
        %p170 = scmp.lt.s32.totalorder %s169, 5
        %s171 = scalar_select %p170, %s169, 5
        %s172 = smul.addr %s171, 8
        %s173 = scalar_lea.vmem %s0, %s172
        %p174 = pneg %p36
        %p175 = pneg %p33
        %s176 = smul.u32 3, %s15
        %p177 = scmp.lt.s32.totalorder %s176, 5
        %s178 = scalar_select %p177, %s176, 5
        %s179 = smul.addr %s178, 8
        %s180 = scalar_lea.vmem %s1, %s179
        %p181 = pneg %p62
        %p182 = pneg %p59
        %p183 = pneg %p83
        %p184 = pneg %p80
        %p185 = pneg %p109
        %p186 = pneg %p106
        %s187 = smul.u32 3, %s15
        %p188 = scmp.lt.s32.totalorder %s187, 5
        %s189 = scalar_select %p188, %s187, 5
        %s190 = smul.addr %s189, 8
        %s191 = scalar_lea.vmem %s3, %s190
        %s192 = smul.u32 3, %s15
        %p193 = scmp.lt.s32.totalorder %s192, 5
        %s194 = scalar_select %p193, %s192, 5
        %s195 = smul.addr %s194, 8
        %s196 = scalar_lea.vmem %s0, %s195
        %s197 = smul.u32 3, %s15
        %s198 = smul.u32 3, %s15
        %p199 = scmp.lt.s32.totalorder %s198, 5
        %s200 = scalar_select %p199, %s198, 5
        %s201 = smul.addr %s200, 8
        %s202 = scalar_lea.vmem %s1, %s201
        %s203 = smul.u32 3, %s15
        %s204 = smul.u32 3, %s15
        %p205 = scmp.lt.s32.totalorder %s204, 5
        %s206 = scalar_select %p205, %s204, 5
        %s207 = smul.addr %s206, 8
        %s208 = scalar_lea.vmem %s3, %s207
        %s209 = smul.u32 3, %s15
        %s210 = sld [smem:[#allocation2]]
        %s211 = sld [smem:[#allocation2 + $0x1]]
        %s212 = sld [smem:[#allocation2 + $0x2]]
        %s213 = sld [smem:[#allocation2 + $0x3]]
        %s214 = sld [smem:[#allocation2 + $0x4]]
        %v215 = vld [vmem:[%s196] sm:$0xff]
        %v216 = vld [vmem:[%s196 + $0x8] sm:$0xff]
        %v217 = vld [vmem:[%s196 + $0x10] sm:$0xff]
        %v218 = vld [vmem:[%s202] sm:$0xff]
        %v219 = vld [vmem:[%s202 + $0x8] sm:$0xff]
        %v220 = vld [vmem:[%s202 + $0x10] sm:$0xff]
        %v221 = vstv %s210
        %v222 = vmul.f32 %v221, %v215
        %v223 = vmul.f32 %v221, %v216
        %v224 = vmul.f32 %v221, %v217
        %v225 = vstv %s211
        %v226 = vmul.f32 %v225, %v218
        %v227 = vmul.f32 %v225, %v219
        %v228 = vmul.f32 %v225, %v220
        %v229 = vsub.f32 %v222, %v226
        %v230 = vsub.f32 %v223, %v227
        %v231 = vsub.f32 %v224, %v228
        %v232 = vmax.f32 %v229, -1.0
        %v233 = vmax.f32 %v230, -1.0
        %v234 = vmax.f32 %v231, -1.0
        %v235 = vmin.f32 %v232, 1.0
        %v236 = vmin.f32 %v233, 1.0
        %v237 = vmin.f32 %v234, 1.0
        %v238 = vsub.f32 %v222, %v235
        %v239 = vsub.f32 %v223, %v236
        %v240 = vsub.f32 %v224, %v237
        %v241 = vstv %s212
        %v242 = vmul.f32 %v238, %v241
        %v243 = vmul.f32 %v239, %v241
        %v244 = vmul.f32 %v240, %v241
        %v245 = vstv %s213
        %v246 = vmul.f32 %v245, %v235
        %v247 = vmul.f32 %v245, %v236
        %v248 = vmul.f32 %v245, %v237
        %v249 = vstv %s214
        %v250 = vmul.f32 %v249, %v242
        %v251 = vmul.f32 %v249, %v243
        %v252 = vmul.f32 %v249, %v244
        %v253 = vadd.f32 %v246, %v250
        %v254 = vadd.f32 %v247, %v251
        %v255 = vadd.f32 %v248, %v252
        %256 = vst [vmem:[%s208] sm:$0xff] %v253
        %257 = vst [vmem:[%s208 + $0x8] sm:$0xff] %v254
        %258 = vst [vmem:[%s208 + $0x10] sm:$0xff] %v255
        %s259 = smul.u32 3, %s15
        %p260 = scmp.lt.s32.totalorder %s259, 5
        %s261 = scalar_select %p260, %s259, 5
        %s262 = smul.addr %s261, 8
        %s263 = scalar_lea.vmem %s3, %s262
        // Predicated region
        $region37: #{closed_call.7} parent=31 // pred_check
          %p264 = pneg %p106
        $region38: #{closed_call.7} parent=31 // pred_check_branch
          %266 = sbr.rel (%p264) target = $region40
        $region39: #{closed_call.7} parent=31 // pred_region
          %s267 = smul.u32 3, %s15
        $region40: #{closed_call.7} parent=31 // pred_fallthru
          _
      $region32: #{closed_call.7} parent=5 // pred_fallthru
        _
      %p268 = scmp.le.s32.totalorder 2, %s10
      // Predicated region
      $region41: #{closed_call.7} parent=5 // pred_check
        %p269 = pneg %p268
      $region42: #{closed_call.7} parent=5 // pred_check_branch
        %271 = sbr.rel (%p269) target = $region44
      $region43: #{closed_call.7} parent=5 // pred_region
        %s272 = ssub.s32 %s10, 2
        // Predicated region
        $region45: #{closed_call.7} parent=43 // pred_check
          %p273 = pneg %p112
        $region46: #{closed_call.7} parent=43 // pred_check_branch
          %275 = sbr.rel (%p273) target = $region48
        $region47: #{closed_call.7} parent=43 // pred_region
          %s276 = smul.u32 3, %s16
          %p277 = scmp.lt.s32.totalorder %s276, 5
          %s278 = scalar_select %p277, %s276, 5
          %s279 = smul.addr %s278, 8
          %s280 = scalar_lea.vmem %s3, %s279
        $region48: #{closed_call.7} parent=43 // pred_fallthru
          _
      $region44: #{closed_call.7} parent=5 // pred_fallthru
        _
    $region6: #{closed_call.7} parent=1 // loop_footer
      %s14 = sadd.s32 1, %s10
    $region7: #{closed_call.7} parent=1 // loop_footer_branch
      %9 = sbr.rel target = $region3
    $region8: #{closed_call.7} parent=1 // loop_exit
      _
    %281 = vsyncpa [#allocation3], 1
    %s282 = scalar_lea.sflag [#allocation3], 1
    %283 = vsyncpa %s282, 1

</llo_original>
